<compile_context>
chip_gen: v5e
topology: v5e:2x2
jax: 0.10.0
libtpu: 0.0.40
codegen_flags: <defaults>
</compile_context>

<pallas_src>
import functools
import math

import jax
import jax.numpy as jnp
import numpy as np
from jax import lax
from jax.experimental import pallas as pl
from jax.experimental.pallas import tpu as pltpu


# ---- exact GELU: erf via Abramowitz–Stegun 7.1.26 (|abs err| < 1.5e-7) ----
def _erf(z):
    a1, a2, a3, a4, a5 = 0.254829592, -0.284496736, 1.421413741, -1.453152027, 1.061405429
    p = 0.3275911
    s = jnp.where(z < 0.0, -1.0, 1.0)
    a = jnp.abs(z)
    d = 1.0 + p * a
    t0 = pl.reciprocal(d, approx=True)       # EUP vrcp (off the saturated VALU slot)
    t = t0 * (2.0 - d * t0)                  # one Newton step -> ~f32-exact 1/d
    poly = ((((a5 * t + a4) * t + a3) * t + a2) * t + a1) * t
    return s * (1.0 - poly * jnp.exp(-a * a))


def _gelu_exact(x):
    return 0.5 * x * (1.0 + _erf(x * 0.7071067811865476))


# --------------------------------- Pallas kernel ---------------------------------
def _mask_cnn_kernel(x_ref, keep9_ref, edge_ref, wblk_ref, mavg_ref,
                     bc_ref, lnw_ref, lnb_ref, out_ref, *, depth, W):
    # Block = (TB*C, HWp) batch-folded, lane-dense slab.
    TBC, HWp = x_ref.shape
    x = x_ref[...]                      # (TBC, HWp)
    keep9 = keep9_ref[...]              # (TBC, HWp)  (1 - pad_mask)/9, pre-broadcast
    edge = edge_ref[...]                # (4, HWp)    0/1 destination-validity masks

    # Hoisted broadcasts: JAX does not CSE broadcast_in_dim, so do these ONCE instead
    # of re-emitting them in every unrolled depth iteration.
    not_c0 = jnp.broadcast_to(edge[0:1, :], (TBC, HWp))   # left-neighbor invalid @ w==0
    not_cL = jnp.broadcast_to(edge[1:2, :], (TBC, HWp))   # right-neighbor invalid @ w==W-1
    not_r0 = jnp.broadcast_to(edge[2:3, :], (TBC, HWp))   # up-neighbor invalid @ h==0
    not_rL = jnp.broadcast_to(edge[3:4, :], (TBC, HWp))   # down-neighbor invalid @ h==H-1
    mavg = mavg_ref[...]                # (TBC, TBC) block-diag channel-mean matrix

    dn = (((1,), (0,)), ((), ()))       # plain 2-D matmul dimension numbers

    res = x                             # `_x` in the PyTorch code
    cur = x
    for d in range(depth):
        # --- MaskConv2d: masked_fill(mask, 0), with the 1/9 pool scale folded in ---
        xm = cur * keep9
        # --- AvgPool2d(3,1,1, count_include_pad=True): separable 3-tap stencil via
        #     circular lane rolls (XLU) + destination edge masks (zero padding) ---
        sw = (xm
              + pltpu.roll(xm, 1, axis=1) * not_c0
              + pltpu.roll(xm, HWp - 1, axis=1) * not_cL)
        pooled = (sw
                  + pltpu.roll(sw, W, axis=1) * not_r0
                  + pltpu.roll(sw, HWp - W, axis=1) * not_rL)
        # --- 1x1 conv over channels: block-diagonal kron(I_TB, W_d) on the MXU ---
        conv = lax.dot_general(wblk_ref[d], pooled, dn,
                               preferred_element_type=jnp.float32)
        # --- conv bias + residual: x = conv(x) + _x ---
        xr = conv + bc_ref[d] + res                       # (TBC,1) lane-broadcasts
        # --- LayerNorm over channels (dim_index=1), biased var, eps=1e-6.
        #     Channel mean/var reduce+broadcast via kron(I_TB, 1/C) matmuls (MXU). ---
        mean = lax.dot_general(mavg, xr, dn, preferred_element_type=jnp.float32)
        ctr = xr - mean
        var = lax.dot_general(mavg, ctr * ctr, dn, preferred_element_type=jnp.float32)
        xln = ctr * lax.rsqrt(var + 1e-6) * lnw_ref[d] + lnb_ref[d]
        res = xln
        if d < depth - 1:
            cur = _gelu_exact(xln)      # nn.GELU() (exact, erf-based)
        # The last GELU and the final MaskConv2d do not affect the returned `_x`.
    out_ref[...] = res


# --------------------------------- wrapper ---------------------------------
@functools.partial(jax.jit, static_argnames=("depth",))
def mask_cnn_forward(x, mask, conv_w, conv_b, ln_w, ln_b, *, depth):
    """x: (B, C, H, W) f32; mask: (B, 1, H, W) bool (True = pad)."""
    B, C, H, W = x.shape
    HW = H * W
    HWp = pl.cdiv(HW, 128) * 128                 # lane-dense (unmasked vst) spatial axis

    # ---- batch tile: fold batch into the sublane axis ----
    unit = 8 // math.gcd(C, 8)                   # smallest TB with (TB*C) % 8 == 0
    n_units = pl.cdiv(B, unit)
    tb_units = n_units
    tb_units = min(tb_units, max(1, 256 // (unit * C)))           # TBC <= ~256 (MXU tile)
    tb_units = min(tb_units, max(1, (1024 * 1024) // (unit * C * HWp)))  # ~24MiB pipeline
    if n_units >= 2:                                              # v7x: feed both TCs
        tb_units = min(tb_units, pl.cdiv(n_units, 2))
    TB = max(1, tb_units) * unit
    grid_b = pl.cdiv(B, TB)
    B_pad = grid_b * TB
    TBC = TB * C

    # ---- batch-varying slabs (pre-broadcast keep mask; pad batch rows & lanes) ----
    x_flat = x.astype(jnp.float32).reshape(B * C, HW)
    keep9 = ((1.0 - mask.astype(jnp.float32)) * (1.0 / 9.0)).reshape(B, 1, HW)
    keep9 = jnp.broadcast_to(keep9, (B, C, HW)).reshape(B * C, HW)
    pad_rows, pad_lanes = (B_pad - B) * C, HWp - HW
    x_p = jnp.pad(x_flat, ((0, pad_rows), (0, pad_lanes)))
    keep9_p = jnp.pad(keep9, ((0, pad_rows), (0, pad_lanes)))     # pad lanes/rows -> 0

    # ---- edge masks for the circular rolls (destination validity, pad lanes = 0) ----
    idx = jnp.arange(HWp)
    col, row, valid = idx % W, idx // W, idx < HW
    edge = jnp.stack([valid & (col != 0), valid & (col != W - 1),
                      valid & (row != 0), valid & (row != H - 1)]).astype(jnp.float32)

    # ---- block-diagonal MXU operands + folded per-row constants ----
    eye_tb = jnp.eye(TB, dtype=jnp.float32)
    wblk = jnp.stack([jnp.kron(eye_tb, conv_w[d].astype(jnp.float32))
                      for d in range(depth)])                     # (depth, TBC, TBC)
    mavg = jnp.kron(eye_tb, jnp.full((C, C), 1.0 / C, jnp.float32))  # (TBC, TBC)
    cb = jnp.tile(conv_b.astype(jnp.float32), (1, TB)).reshape(depth, TBC, 1)
    lw = jnp.tile(ln_w.astype(jnp.float32), (1, TB)).reshape(depth, TBC, 1)
    lb = jnp.tile(ln_b.astype(jnp.float32), (1, TB)).reshape(depth, TBC, 1)

    kernel = functools.partial(_mask_cnn_kernel, depth=depth, W=W)
    out_p = pl.pallas_call(
        kernel,
        out_shape=jax.ShapeDtypeStruct((B_pad * C, HWp), jnp.float32),
        grid=(grid_b,),
        in_specs=[
            pl.BlockSpec((TBC, HWp), lambda b: (b, 0)),           # x slab
            pl.BlockSpec((TBC, HWp), lambda b: (b, 0)),           # keep/9 slab
            pl.BlockSpec((4, HWp), lambda b: (0, 0)),             # edge masks
            pl.BlockSpec((depth, TBC, TBC), lambda b: (0, 0, 0)), # block-diag conv W
            pl.BlockSpec((TBC, TBC), lambda b: (0, 0)),           # block-diag mean M
            pl.BlockSpec((depth, TBC, 1), lambda b: (0, 0, 0)),   # conv bias
            pl.BlockSpec((depth, TBC, 1), lambda b: (0, 0, 0)),   # LN weight
            pl.BlockSpec((depth, TBC, 1), lambda b: (0, 0, 0)),   # LN bias
        ],
        out_specs=pl.BlockSpec((TBC, HWp), lambda b: (b, 0)),
        compiler_params=pltpu.CompilerParams(
            dimension_semantics=("parallel",),
            vmem_limit_bytes=48 * 1024 * 1024),                   # safe on v5e/v6e/v7x
    )(x_p, keep9_p, edge, wblk, mavg, cb, lw, lb)
    return out_p[:B * C, :HW].reshape(B, C, H, W)


# ------------------------- pure-JAX reference (for self-check) -------------------------
def _ref_forward(x, mask, conv_w, conv_b, ln_w, ln_b, depth):
    keep = 1.0 - mask.astype(jnp.float32)
    res = x
    cur = x
    for d in range(depth):
        xm = cur * keep
        s = lax.reduce_window(xm, 0.0, lax.add, (1, 1, 3, 3), (1, 1, 1, 1),
                              [(0, 0), (0, 0), (1, 1), (1, 1)])
        pooled = s / 9.0
        conv = jnp.einsum("oi,bihw->bohw", conv_w[d], pooled,
                          precision=lax.Precision.HIGHEST) + conv_b[d][None, :, None, None]
        xr = conv + res
        u = jnp.mean(xr, axis=1, keepdims=True)
        v = jnp.mean((xr - u) ** 2, axis=1, keepdims=True)
        xn = (xr - u) / jnp.sqrt(v + 1e-6)
        xln = xn * ln_w[d][None, :, None, None] + ln_b[d][None, :, None, None]
        res = xln
        cur = jax.nn.gelu(xln, approximate=False)
    return res


if __name__ == "__main__":
    key = jax.random.PRNGKey(0)
    B, C_in, C_out, H, W, depth = 2, 4, 8, 16, 16, 3
    # NOTE: MaskCNN returns `_x` (last LayerNorm output) with `input_channels` channels;
    # `output_channels` only parameterizes the final (dead) MaskConv2d.
    kx, kcw, kcb, klw, klb = jax.random.split(key, 5)
    x = jax.random.normal(kx, (B, C_in, H, W), dtype=jnp.float32)
    lens = jnp.array([H, 11])
    pad = jnp.arange(H)[None, :] >= lens[:, None]          # (B, H) True where padded
    mask = (pad[:, :, None] | pad[:, None, :])[:, None]    # (B, 1, H, W) bool
    conv_w = 0.3 * jax.random.normal(kcw, (depth, C_in, C_in), dtype=jnp.float32)
    conv_b = 0.1 * jax.random.normal(kcb, (depth, C_in), dtype=jnp.float32)
    # PyTorch init is ones/zeros; perturb to exercise the per-channel affine path.
    ln_w = 1.0 + 0.2 * jax.random.normal(klw, (depth, C_in), dtype=jnp.float32)
    ln_b = 0.2 * jax.random.normal(klb, (depth, C_in), dtype=jnp.float32)

    out = mask_cnn_forward(x, mask, conv_w, conv_b, ln_w, ln_b, depth=depth)
    out = jax.block_until_ready(out)

    ref = _ref_forward(x, mask, conv_w, conv_b, ln_w, ln_b, depth)
    assert out.shape == (B, C_in, H, W)
    # 1e-3: headroom for EUP-approximate rsqrt/exp/recip paths vs the XLA reference.
    np.testing.assert_allclose(np.asarray(out), np.asarray(ref), rtol=1e-3, atol=1e-3)
    print("KERNEL_OK")
</pallas_src>

<mosaic_0001>
module attributes {stable_mosaic.version = 11 : i64} {
  func.func @_mask_cnn_kernel(%arg0: i32, %arg1: memref<8x256xf32, #tpu.memory_space<vmem>>, %arg2: memref<8x256xf32, #tpu.memory_space<vmem>>, %arg3: memref<4x256xf32, #tpu.memory_space<vmem>>, %arg4: memref<3x8x8xf32, #tpu.memory_space<vmem>>, %arg5: memref<8x8xf32, #tpu.memory_space<vmem>>, %arg6: memref<3x8x1xf32, #tpu.memory_space<vmem>>, %arg7: memref<3x8x1xf32, #tpu.memory_space<vmem>>, %arg8: memref<3x8x1xf32, #tpu.memory_space<vmem>>, %arg9: memref<8x256xf32, #tpu.memory_space<vmem>>) attributes {dimension_semantics = [#tpu.dimension_semantics<parallel>], iteration_bounds = array<i64: 1>, scalar_prefetch = 0 : i64, scratch_operands = 0 : i64, tpu.core_type = #tpu.core_type<tc>, window_params = [{transform_indices = @transform_0, window_bounds = array<i64: 8, 256>}, {transform_indices = @transform_1, window_bounds = array<i64: 8, 256>}, {pipeline_mode = #tpu.pipeline_mode<synchronous>, transform_indices = @transform_2, window_bounds = array<i64: 4, 256>}, {pipeline_mode = #tpu.pipeline_mode<synchronous>, transform_indices = @transform_3, window_bounds = array<i64: 3, 8, 8>}, {pipeline_mode = #tpu.pipeline_mode<synchronous>, transform_indices = @transform_4, window_bounds = array<i64: 8, 8>}, {pipeline_mode = #tpu.pipeline_mode<synchronous>, transform_indices = @transform_5, window_bounds = array<i64: 3, 8, 1>}, {pipeline_mode = #tpu.pipeline_mode<synchronous>, transform_indices = @transform_6, window_bounds = array<i64: 3, 8, 1>}, {pipeline_mode = #tpu.pipeline_mode<synchronous>, transform_indices = @transform_7, window_bounds = array<i64: 3, 8, 1>}, {transform_indices = @transform_8, window_bounds = array<i64: 8, 256>}]} {
    %c0 = arith.constant 0 : index
    %c0_0 = arith.constant 0 : index
    %0 = vector.load %arg1[%c0, %c0_0] : memref<8x256xf32, #tpu.memory_space<vmem>>, vector<8x256xf32>
    %c0_1 = arith.constant 0 : index
    %c0_2 = arith.constant 0 : index
    %1 = vector.load %arg2[%c0_1, %c0_2] : memref<8x256xf32, #tpu.memory_space<vmem>>, vector<8x256xf32>
    %c0_3 = arith.constant 0 : index
    %c0_4 = arith.constant 0 : index
    %2 = vector.load %arg3[%c0_3, %c0_4] : memref<4x256xf32, #tpu.memory_space<vmem>>, vector<4x256xf32>
    %3 = vector.extract_strided_slice %2 {offsets = [0, 0], sizes = [1, 256], strides = [1, 1]} : vector<4x256xf32> to vector<1x256xf32>
    %4 = vector.shape_cast %3 : vector<1x256xf32> to vector<1x256xf32>
    %5 = vector.broadcast %4 : vector<1x256xf32> to vector<8x256xf32>
    %6 = vector.extract_strided_slice %2 {offsets = [1, 0], sizes = [1, 256], strides = [1, 1]} : vector<4x256xf32> to vector<1x256xf32>
    %7 = vector.shape_cast %6 : vector<1x256xf32> to vector<1x256xf32>
    %8 = vector.broadcast %7 : vector<1x256xf32> to vector<8x256xf32>
    %9 = vector.extract_strided_slice %2 {offsets = [2, 0], sizes = [1, 256], strides = [1, 1]} : vector<4x256xf32> to vector<1x256xf32>
    %10 = vector.shape_cast %9 : vector<1x256xf32> to vector<1x256xf32>
    %11 = vector.broadcast %10 : vector<1x256xf32> to vector<8x256xf32>
    %12 = vector.extract_strided_slice %2 {offsets = [3, 0], sizes = [1, 256], strides = [1, 1]} : vector<4x256xf32> to vector<1x256xf32>
    %13 = vector.shape_cast %12 : vector<1x256xf32> to vector<1x256xf32>
    %14 = vector.broadcast %13 : vector<1x256xf32> to vector<8x256xf32>
    %c0_5 = arith.constant 0 : index
    %c0_6 = arith.constant 0 : index
    %15 = vector.load %arg5[%c0_5, %c0_6] : memref<8x8xf32, #tpu.memory_space<vmem>>, vector<8x8xf32>
    %16 = arith.mulf %0, %1 : vector<8x256xf32>
    %c1_i32 = arith.constant 1 : i32
    %17 = tpu.dynamic_rotate %16 by %c1_i32 dim 1 : vector<8x256xf32>, i32 -> vector<8x256xf32>
    %18 = arith.mulf %17, %5 : vector<8x256xf32>
    %19 = arith.addf %16, %18 : vector<8x256xf32>
    %c255_i32 = arith.constant 255 : i32
    %20 = tpu.dynamic_rotate %16 by %c255_i32 dim 1 : vector<8x256xf32>, i32 -> vector<8x256xf32>
    %21 = arith.mulf %20, %8 : vector<8x256xf32>
    %22 = arith.addf %19, %21 : vector<8x256xf32>
    %c16_i32 = arith.constant 16 : i32
    %23 = tpu.dynamic_rotate %22 by %c16_i32 dim 1 : vector<8x256xf32>, i32 -> vector<8x256xf32>
    %24 = arith.mulf %23, %11 : vector<8x256xf32>
    %25 = arith.addf %22, %24 : vector<8x256xf32>
    %c240_i32 = arith.constant 240 : i32
    %26 = tpu.dynamic_rotate %22 by %c240_i32 dim 1 : vector<8x256xf32>, i32 -> vector<8x256xf32>
    %27 = arith.mulf %26, %14 : vector<8x256xf32>
    %28 = arith.addf %25, %27 : vector<8x256xf32>
    %c0_7 = arith.constant 0 : index
    %c0_8 = arith.constant 0 : index
    %c0_9 = arith.constant 0 : index
    %29 = vector.load %arg4[%c0_7, %c0_8, %c0_9] : memref<3x8x8xf32, #tpu.memory_space<vmem>>, vector<1x8x8xf32>
    %30 = vector.shape_cast %29 : vector<1x8x8xf32> to vector<8x8xf32>
    %cst = arith.constant dense<0.000000e+00> : vector<8x256xf32>
    %31 = tpu.matmul %30, %28, %cst {dimension_numbers = #tpu.dot_dimension_numbers<[1], [0], [0], [1], [0, 0, 1, 1], [], []>} : vector<8x8xf32>, vector<8x256xf32>, vector<8x256xf32> -> vector<8x256xf32>
    %c0_10 = arith.constant 0 : index
    %c0_11 = arith.constant 0 : index
    %c0_12 = arith.constant 0 : index
    %32 = vector.load %arg6[%c0_10, %c0_11, %c0_12] : memref<3x8x1xf32, #tpu.memory_space<vmem>>, vector<1x8x1xf32>
    %33 = vector.shape_cast %32 : vector<1x8x1xf32> to vector<8x1xf32>
    %34 = vector.broadcast %33 : vector<8x1xf32> to vector<8x256xf32>
    %35 = arith.addf %31, %34 : vector<8x256xf32>
    %36 = arith.addf %35, %0 : vector<8x256xf32>
    %cst_13 = arith.constant dense<0.000000e+00> : vector<8x256xf32>
    %37 = tpu.matmul %15, %36, %cst_13 {dimension_numbers = #tpu.dot_dimension_numbers<[1], [0], [0], [1], [0, 0, 1, 1], [], []>} : vector<8x8xf32>, vector<8x256xf32>, vector<8x256xf32> -> vector<8x256xf32>
    %38 = arith.subf %36, %37 : vector<8x256xf32>
    %39 = arith.mulf %38, %38 : vector<8x256xf32>
    %cst_14 = arith.constant dense<0.000000e+00> : vector<8x256xf32>
    %40 = tpu.matmul %15, %39, %cst_14 {dimension_numbers = #tpu.dot_dimension_numbers<[1], [0], [0], [1], [0, 0, 1, 1], [], []>} : vector<8x8xf32>, vector<8x256xf32>, vector<8x256xf32> -> vector<8x256xf32>
    %cst_15 = arith.constant 9.99999997E-7 : f32
    %41 = vector.broadcast %cst_15 : f32 to vector<8x256xf32>
    %42 = arith.addf %40, %41 : vector<8x256xf32>
    %43 = math.rsqrt %42 : vector<8x256xf32>
    %44 = arith.mulf %38, %43 : vector<8x256xf32>
    %c0_16 = arith.constant 0 : index
    %c0_17 = arith.constant 0 : index
    %c0_18 = arith.constant 0 : index
    %45 = vector.load %arg7[%c0_16, %c0_17, %c0_18] : memref<3x8x1xf32, #tpu.memory_space<vmem>>, vector<1x8x1xf32>
    %46 = vector.shape_cast %45 : vector<1x8x1xf32> to vector<8x1xf32>
    %47 = vector.broadcast %46 : vector<8x1xf32> to vector<8x256xf32>
    %48 = arith.mulf %44, %47 : vector<8x256xf32>
    %c0_19 = arith.constant 0 : index
    %c0_20 = arith.constant 0 : index
    %c0_21 = arith.constant 0 : index
    %49 = vector.load %arg8[%c0_19, %c0_20, %c0_21] : memref<3x8x1xf32, #tpu.memory_space<vmem>>, vector<1x8x1xf32>
    %50 = vector.shape_cast %49 : vector<1x8x1xf32> to vector<8x1xf32>
    %51 = vector.broadcast %50 : vector<8x1xf32> to vector<8x256xf32>
    %52 = arith.addf %48, %51 : vector<8x256xf32>
    %cst_22 = arith.constant 5.000000e-01 : f32
    %53 = vector.broadcast %cst_22 : f32 to vector<8x256xf32>
    %54 = arith.mulf %53, %52 : vector<8x256xf32>
    %cst_23 = arith.constant 0.707106769 : f32
    %55 = vector.broadcast %cst_23 : f32 to vector<8x256xf32>
    %56 = arith.mulf %52, %55 : vector<8x256xf32>
    %cst_24 = arith.constant 0.000000e+00 : f32
    %57 = vector.broadcast %cst_24 : f32 to vector<8x256xf32>
    %58 = arith.cmpf olt, %56, %57 : vector<8x256xf32>
    %cst_25 = arith.constant -1.000000e+00 : f32
    %cst_26 = arith.constant 1.000000e+00 : f32
    %59 = vector.broadcast %cst_25 : f32 to vector<8x256xf32>
    %60 = vector.broadcast %cst_26 : f32 to vector<8x256xf32>
    %61 = arith.select %58, %59, %60 : vector<8x256xi1>, vector<8x256xf32>
    %62 = math.absf %56 : vector<8x256xf32>
    %cst_27 = arith.constant 0.327591091 : f32
    %63 = vector.broadcast %cst_27 : f32 to vector<8x256xf32>
    %64 = arith.mulf %63, %62 : vector<8x256xf32>
    %cst_28 = arith.constant 1.000000e+00 : f32
    %65 = vector.broadcast %cst_28 : f32 to vector<8x256xf32>
    %66 = arith.addf %65, %64 : vector<8x256xf32>
    %67 = tpu.reciprocal %66 {approx = true} : vector<8x256xf32> -> vector<8x256xf32>
    %68 = arith.mulf %66, %67 : vector<8x256xf32>
    %cst_29 = arith.constant 2.000000e+00 : f32
    %69 = vector.broadcast %cst_29 : f32 to vector<8x256xf32>
    %70 = arith.subf %69, %68 : vector<8x256xf32>
    %71 = arith.mulf %67, %70 : vector<8x256xf32>
    %cst_30 = arith.constant 1.06140542 : f32
    %72 = vector.broadcast %cst_30 : f32 to vector<8x256xf32>
    %73 = arith.mulf %72, %71 : vector<8x256xf32>
    %cst_31 = arith.constant -1.45315206 : f32
    %74 = vector.broadcast %cst_31 : f32 to vector<8x256xf32>
    %75 = arith.addf %73, %74 : vector<8x256xf32>
    %76 = arith.mulf %75, %71 : vector<8x256xf32>
    %cst_32 = arith.constant 1.42141378 : f32
    %77 = vector.broadcast %cst_32 : f32 to vector<8x256xf32>
    %78 = arith.addf %76, %77 : vector<8x256xf32>
    %79 = arith.mulf %78, %71 : vector<8x256xf32>
    %cst_33 = arith.constant -0.284496725 : f32
    %80 = vector.broadcast %cst_33 : f32 to vector<8x256xf32>
    %81 = arith.addf %79, %80 : vector<8x256xf32>
    %82 = arith.mulf %81, %71 : vector<8x256xf32>
    %cst_34 = arith.constant 0.254829586 : f32
    %83 = vector.broadcast %cst_34 : f32 to vector<8x256xf32>
    %84 = arith.addf %82, %83 : vector<8x256xf32>
    %85 = arith.mulf %84, %71 : vector<8x256xf32>
    %cst_35 = arith.constant 0.000000e+00 : f32
    %86 = vector.broadcast %cst_35 : f32 to vector<8x256xf32>
    %87 = arith.subf %86, %62 : vector<8x256xf32>
    %88 = arith.mulf %87, %62 : vector<8x256xf32>
    %89 = math.exp %88 : vector<8x256xf32>
    %90 = arith.mulf %85, %89 : vector<8x256xf32>
    %cst_36 = arith.constant 1.000000e+00 : f32
    %91 = vector.broadcast %cst_36 : f32 to vector<8x256xf32>
    %92 = arith.subf %91, %90 : vector<8x256xf32>
    %93 = arith.mulf %61, %92 : vector<8x256xf32>
    %cst_37 = arith.constant 1.000000e+00 : f32
    %94 = vector.broadcast %cst_37 : f32 to vector<8x256xf32>
    %95 = arith.addf %94, %93 : vector<8x256xf32>
    %96 = arith.mulf %54, %95 : vector<8x256xf32>
    %97 = arith.mulf %96, %1 : vector<8x256xf32>
    %c1_i32_38 = arith.constant 1 : i32
    %98 = tpu.dynamic_rotate %97 by %c1_i32_38 dim 1 : vector<8x256xf32>, i32 -> vector<8x256xf32>
    %99 = arith.mulf %98, %5 : vector<8x256xf32>
    %100 = arith.addf %97, %99 : vector<8x256xf32>
    %c255_i32_39 = arith.constant 255 : i32
    %101 = tpu.dynamic_rotate %97 by %c255_i32_39 dim 1 : vector<8x256xf32>, i32 -> vector<8x256xf32>
    %102 = arith.mulf %101, %8 : vector<8x256xf32>
    %103 = arith.addf %100, %102 : vector<8x256xf32>
    %c16_i32_40 = arith.constant 16 : i32
    %104 = tpu.dynamic_rotate %103 by %c16_i32_40 dim 1 : vector<8x256xf32>, i32 -> vector<8x256xf32>
    %105 = arith.mulf %104, %11 : vector<8x256xf32>
    %106 = arith.addf %103, %105 : vector<8x256xf32>
    %c240_i32_41 = arith.constant 240 : i32
    %107 = tpu.dynamic_rotate %103 by %c240_i32_41 dim 1 : vector<8x256xf32>, i32 -> vector<8x256xf32>
    %108 = arith.mulf %107, %14 : vector<8x256xf32>
    %109 = arith.addf %106, %108 : vector<8x256xf32>
    %c1 = arith.constant 1 : index
    %c0_42 = arith.constant 0 : index
    %c0_43 = arith.constant 0 : index
    %110 = vector.load %arg4[%c1, %c0_42, %c0_43] : memref<3x8x8xf32, #tpu.memory_space<vmem>>, vector<1x8x8xf32>
    %111 = vector.shape_cast %110 : vector<1x8x8xf32> to vector<8x8xf32>
    %cst_44 = arith.constant dense<0.000000e+00> : vector<8x256xf32>
    %112 = tpu.matmul %111, %109, %cst_44 {dimension_numbers = #tpu.dot_dimension_numbers<[1], [0], [0], [1], [0, 0, 1, 1], [], []>} : vector<8x8xf32>, vector<8x256xf32>, vector<8x256xf32> -> vector<8x256xf32>
    %c1_45 = arith.constant 1 : index
    %c0_46 = arith.constant 0 : index
    %c0_47 = arith.constant 0 : index
    %113 = vector.load %arg6[%c1_45, %c0_46, %c0_47] : memref<3x8x1xf32, #tpu.memory_space<vmem>>, vector<1x8x1xf32>
    %114 = vector.shape_cast %113 : vector<1x8x1xf32> to vector<8x1xf32>
    %115 = vector.broadcast %114 : vector<8x1xf32> to vector<8x256xf32>
    %116 = arith.addf %112, %115 : vector<8x256xf32>
    %117 = arith.addf %116, %52 : vector<8x256xf32>
    %cst_48 = arith.constant dense<0.000000e+00> : vector<8x256xf32>
    %118 = tpu.matmul %15, %117, %cst_48 {dimension_numbers = #tpu.dot_dimension_numbers<[1], [0], [0], [1], [0, 0, 1, 1], [], []>} : vector<8x8xf32>, vector<8x256xf32>, vector<8x256xf32> -> vector<8x256xf32>
    %119 = arith.subf %117, %118 : vector<8x256xf32>
    %120 = arith.mulf %119, %119 : vector<8x256xf32>
    %cst_49 = arith.constant dense<0.000000e+00> : vector<8x256xf32>
    %121 = tpu.matmul %15, %120, %cst_49 {dimension_numbers = #tpu.dot_dimension_numbers<[1], [0], [0], [1], [0, 0, 1, 1], [], []>} : vector<8x8xf32>, vector<8x256xf32>, vector<8x256xf32> -> vector<8x256xf32>
    %cst_50 = arith.constant 9.99999997E-7 : f32
    %122 = vector.broadcast %cst_50 : f32 to vector<8x256xf32>
    %123 = arith.addf %121, %122 : vector<8x256xf32>
    %124 = math.rsqrt %123 : vector<8x256xf32>
    %125 = arith.mulf %119, %124 : vector<8x256xf32>
    %c1_51 = arith.constant 1 : index
    %c0_52 = arith.constant 0 : index
    %c0_53 = arith.constant 0 : index
    %126 = vector.load %arg7[%c1_51, %c0_52, %c0_53] : memref<3x8x1xf32, #tpu.memory_space<vmem>>, vector<1x8x1xf32>
    %127 = vector.shape_cast %126 : vector<1x8x1xf32> to vector<8x1xf32>
    %128 = vector.broadcast %127 : vector<8x1xf32> to vector<8x256xf32>
    %129 = arith.mulf %125, %128 : vector<8x256xf32>
    %c1_54 = arith.constant 1 : index
    %c0_55 = arith.constant 0 : index
    %c0_56 = arith.constant 0 : index
    %130 = vector.load %arg8[%c1_54, %c0_55, %c0_56] : memref<3x8x1xf32, #tpu.memory_space<vmem>>, vector<1x8x1xf32>
    %131 = vector.shape_cast %130 : vector<1x8x1xf32> to vector<8x1xf32>
    %132 = vector.broadcast %131 : vector<8x1xf32> to vector<8x256xf32>
    %133 = arith.addf %129, %132 : vector<8x256xf32>
    %cst_57 = arith.constant 5.000000e-01 : f32
    %134 = vector.broadcast %cst_57 : f32 to vector<8x256xf32>
    %135 = arith.mulf %134, %133 : vector<8x256xf32>
    %cst_58 = arith.constant 0.707106769 : f32
    %136 = vector.broadcast %cst_58 : f32 to vector<8x256xf32>
    %137 = arith.mulf %133, %136 : vector<8x256xf32>
    %cst_59 = arith.constant 0.000000e+00 : f32
    %138 = vector.broadcast %cst_59 : f32 to vector<8x256xf32>
    %139 = arith.cmpf olt, %137, %138 : vector<8x256xf32>
    %cst_60 = arith.constant -1.000000e+00 : f32
    %cst_61 = arith.constant 1.000000e+00 : f32
    %140 = vector.broadcast %cst_60 : f32 to vector<8x256xf32>
    %141 = vector.broadcast %cst_61 : f32 to vector<8x256xf32>
    %142 = arith.select %139, %140, %141 : vector<8x256xi1>, vector<8x256xf32>
    %143 = math.absf %137 : vector<8x256xf32>
    %cst_62 = arith.constant 0.327591091 : f32
    %144 = vector.broadcast %cst_62 : f32 to vector<8x256xf32>
    %145 = arith.mulf %144, %143 : vector<8x256xf32>
    %cst_63 = arith.constant 1.000000e+00 : f32
    %146 = vector.broadcast %cst_63 : f32 to vector<8x256xf32>
    %147 = arith.addf %146, %145 : vector<8x256xf32>
    %148 = tpu.reciprocal %147 {approx = true} : vector<8x256xf32> -> vector<8x256xf32>
    %149 = arith.mulf %147, %148 : vector<8x256xf32>
    %cst_64 = arith.constant 2.000000e+00 : f32
    %150 = vector.broadcast %cst_64 : f32 to vector<8x256xf32>
    %151 = arith.subf %150, %149 : vector<8x256xf32>
    %152 = arith.mulf %148, %151 : vector<8x256xf32>
    %cst_65 = arith.constant 1.06140542 : f32
    %153 = vector.broadcast %cst_65 : f32 to vector<8x256xf32>
    %154 = arith.mulf %153, %152 : vector<8x256xf32>
    %cst_66 = arith.constant -1.45315206 : f32
    %155 = vector.broadcast %cst_66 : f32 to vector<8x256xf32>
    %156 = arith.addf %154, %155 : vector<8x256xf32>
    %157 = arith.mulf %156, %152 : vector<8x256xf32>
    %cst_67 = arith.constant 1.42141378 : f32
    %158 = vector.broadcast %cst_67 : f32 to vector<8x256xf32>
    %159 = arith.addf %157, %158 : vector<8x256xf32>
    %160 = arith.mulf %159, %152 : vector<8x256xf32>
    %cst_68 = arith.constant -0.284496725 : f32
    %161 = vector.broadcast %cst_68 : f32 to vector<8x256xf32>
    %162 = arith.addf %160, %161 : vector<8x256xf32>
    %163 = arith.mulf %162, %152 : vector<8x256xf32>
    %cst_69 = arith.constant 0.254829586 : f32
    %164 = vector.broadcast %cst_69 : f32 to vector<8x256xf32>
    %165 = arith.addf %163, %164 : vector<8x256xf32>
    %166 = arith.mulf %165, %152 : vector<8x256xf32>
    %cst_70 = arith.constant 0.000000e+00 : f32
    %167 = vector.broadcast %cst_70 : f32 to vector<8x256xf32>
    %168 = arith.subf %167, %143 : vector<8x256xf32>
    %169 = arith.mulf %168, %143 : vector<8x256xf32>
    %170 = math.exp %169 : vector<8x256xf32>
    %171 = arith.mulf %166, %170 : vector<8x256xf32>
    %cst_71 = arith.constant 1.000000e+00 : f32
    %172 = vector.broadcast %cst_71 : f32 to vector<8x256xf32>
    %173 = arith.subf %172, %171 : vector<8x256xf32>
    %174 = arith.mulf %142, %173 : vector<8x256xf32>
    %cst_72 = arith.constant 1.000000e+00 : f32
    %175 = vector.broadcast %cst_72 : f32 to vector<8x256xf32>
    %176 = arith.addf %175, %174 : vector<8x256xf32>
    %177 = arith.mulf %135, %176 : vector<8x256xf32>
    %178 = arith.mulf %177, %1 : vector<8x256xf32>
    %c1_i32_73 = arith.constant 1 : i32
    %179 = tpu.dynamic_rotate %178 by %c1_i32_73 dim 1 : vector<8x256xf32>, i32 -> vector<8x256xf32>
    %180 = arith.mulf %179, %5 : vector<8x256xf32>
    %181 = arith.addf %178, %180 : vector<8x256xf32>
    %c255_i32_74 = arith.constant 255 : i32
    %182 = tpu.dynamic_rotate %178 by %c255_i32_74 dim 1 : vector<8x256xf32>, i32 -> vector<8x256xf32>
    %183 = arith.mulf %182, %8 : vector<8x256xf32>
    %184 = arith.addf %181, %183 : vector<8x256xf32>
    %c16_i32_75 = arith.constant 16 : i32
    %185 = tpu.dynamic_rotate %184 by %c16_i32_75 dim 1 : vector<8x256xf32>, i32 -> vector<8x256xf32>
    %186 = arith.mulf %185, %11 : vector<8x256xf32>
    %187 = arith.addf %184, %186 : vector<8x256xf32>
    %c240_i32_76 = arith.constant 240 : i32
    %188 = tpu.dynamic_rotate %184 by %c240_i32_76 dim 1 : vector<8x256xf32>, i32 -> vector<8x256xf32>
    %189 = arith.mulf %188, %14 : vector<8x256xf32>
    %190 = arith.addf %187, %189 : vector<8x256xf32>
    %c2 = arith.constant 2 : index
    %c0_77 = arith.constant 0 : index
    %c0_78 = arith.constant 0 : index
    %191 = vector.load %arg4[%c2, %c0_77, %c0_78] : memref<3x8x8xf32, #tpu.memory_space<vmem>>, vector<1x8x8xf32>
    %192 = vector.shape_cast %191 : vector<1x8x8xf32> to vector<8x8xf32>
    %cst_79 = arith.constant dense<0.000000e+00> : vector<8x256xf32>
    %193 = tpu.matmul %192, %190, %cst_79 {dimension_numbers = #tpu.dot_dimension_numbers<[1], [0], [0], [1], [0, 0, 1, 1], [], []>} : vector<8x8xf32>, vector<8x256xf32>, vector<8x256xf32> -> vector<8x256xf32>
    %c2_80 = arith.constant 2 : index
    %c0_81 = arith.constant 0 : index
    %c0_82 = arith.constant 0 : index
    %194 = vector.load %arg6[%c2_80, %c0_81, %c0_82] : memref<3x8x1xf32, #tpu.memory_space<vmem>>, vector<1x8x1xf32>
    %195 = vector.shape_cast %194 : vector<1x8x1xf32> to vector<8x1xf32>
    %196 = vector.broadcast %195 : vector<8x1xf32> to vector<8x256xf32>
    %197 = arith.addf %193, %196 : vector<8x256xf32>
    %198 = arith.addf %197, %133 : vector<8x256xf32>
    %cst_83 = arith.constant dense<0.000000e+00> : vector<8x256xf32>
    %199 = tpu.matmul %15, %198, %cst_83 {dimension_numbers = #tpu.dot_dimension_numbers<[1], [0], [0], [1], [0, 0, 1, 1], [], []>} : vector<8x8xf32>, vector<8x256xf32>, vector<8x256xf32> -> vector<8x256xf32>
    %200 = arith.subf %198, %199 : vector<8x256xf32>
    %201 = arith.mulf %200, %200 : vector<8x256xf32>
    %cst_84 = arith.constant dense<0.000000e+00> : vector<8x256xf32>
    %202 = tpu.matmul %15, %201, %cst_84 {dimension_numbers = #tpu.dot_dimension_numbers<[1], [0], [0], [1], [0, 0, 1, 1], [], []>} : vector<8x8xf32>, vector<8x256xf32>, vector<8x256xf32> -> vector<8x256xf32>
    %cst_85 = arith.constant 9.99999997E-7 : f32
    %203 = vector.broadcast %cst_85 : f32 to vector<8x256xf32>
    %204 = arith.addf %202, %203 : vector<8x256xf32>
    %205 = math.rsqrt %204 : vector<8x256xf32>
    %206 = arith.mulf %200, %205 : vector<8x256xf32>
    %c2_86 = arith.constant 2 : index
    %c0_87 = arith.constant 0 : index
    %c0_88 = arith.constant 0 : index
    %207 = vector.load %arg7[%c2_86, %c0_87, %c0_88] : memref<3x8x1xf32, #tpu.memory_space<vmem>>, vector<1x8x1xf32>
    %208 = vector.shape_cast %207 : vector<1x8x1xf32> to vector<8x1xf32>
    %209 = vector.broadcast %208 : vector<8x1xf32> to vector<8x256xf32>
    %210 = arith.mulf %206, %209 : vector<8x256xf32>
    %c2_89 = arith.constant 2 : index
    %c0_90 = arith.constant 0 : index
    %c0_91 = arith.constant 0 : index
    %211 = vector.load %arg8[%c2_89, %c0_90, %c0_91] : memref<3x8x1xf32, #tpu.memory_space<vmem>>, vector<1x8x1xf32>
    %212 = vector.shape_cast %211 : vector<1x8x1xf32> to vector<8x1xf32>
    %213 = vector.broadcast %212 : vector<8x1xf32> to vector<8x256xf32>
    %214 = arith.addf %210, %213 : vector<8x256xf32>
    %c0_92 = arith.constant 0 : index
    %c0_93 = arith.constant 0 : index
    %215 = vector.load %arg9[%c0_92, %c0_93] : memref<8x256xf32, #tpu.memory_space<vmem>>, vector<8x256xf32>
    tpu.vector_store %arg9[%c0_92, %c0_93], %214 {strides = array<i32>} : memref<8x256xf32, #tpu.memory_space<vmem>>, vector<8x256xf32>,
    return
  }
  func.func @transform_0(%arg0: i32) -> (i32, i32) {
    %c0_i32 = arith.constant 0 : i32
    %c0_i32_0 = arith.constant 0 : i32
    return %arg0, %c0_i32 : i32, i32
  }
  func.func @transform_1(%arg0: i32) -> (i32, i32) {
    %c0_i32 = arith.constant 0 : i32
    %c0_i32_0 = arith.constant 0 : i32
    return %arg0, %c0_i32 : i32, i32
  }
  func.func @transform_2(%arg0: i32) -> (i32, i32) {
    %c0_i32 = arith.constant 0 : i32
    %c0_i32_0 = arith.constant 0 : i32
    %c0_i32_1 = arith.constant 0 : i32
    return %c0_i32, %c0_i32_0 : i32, i32
  }
  func.func @transform_3(%arg0: i32) -> (i32, i32, i32) {
    %c0_i32 = arith.constant 0 : i32
    %c0_i32_0 = arith.constant 0 : i32
    %c0_i32_1 = arith.constant 0 : i32
    %c0_i32_2 = arith.constant 0 : i32
    return %c0_i32, %c0_i32_0, %c0_i32_1 : i32, i32, i32
  }
  func.func @transform_4(%arg0: i32) -> (i32, i32) {
    %c0_i32 = arith.constant 0 : i32
    %c0_i32_0 = arith.constant 0 : i32
    %c0_i32_1 = arith.constant 0 : i32
    return %c0_i32, %c0_i32_0 : i32, i32
  }
  func.func @transform_5(%arg0: i32) -> (i32, i32, i32) {
    %c0_i32 = arith.constant 0 : i32
    %c0_i32_0 = arith.constant 0 : i32
    %c0_i32_1 = arith.constant 0 : i32
    %c0_i32_2 = arith.constant 0 : i32
    return %c0_i32, %c0_i32_0, %c0_i32_1 : i32, i32, i32
  }
  func.func @transform_6(%arg0: i32) -> (i32, i32, i32) {
    %c0_i32 = arith.constant 0 : i32
    %c0_i32_0 = arith.constant 0 : i32
    %c0_i32_1 = arith.constant 0 : i32
    %c0_i32_2 = arith.constant 0 : i32
    return %c0_i32, %c0_i32_0, %c0_i32_1 : i32, i32, i32
  }
  func.func @transform_7(%arg0: i32) -> (i32, i32, i32) {
    %c0_i32 = arith.constant 0 : i32
    %c0_i32_0 = arith.constant 0 : i32
    %c0_i32_1 = arith.constant 0 : i32
    %c0_i32_2 = arith.constant 0 : i32
    return %c0_i32, %c0_i32_0, %c0_i32_1 : i32, i32, i32
  }
  func.func @transform_8(%arg0: i32) -> (i32, i32) {
    %c0_i32 = arith.constant 0 : i32
    %c0_i32_0 = arith.constant 0 : i32
    return %arg0, %c0_i32 : i32, i32
  }
}

</mosaic_0001>

<llo_original>
// kernel: mask_cnn_forward.1
$region0: #{mask_cnn_forward.1}
  #allocation0 [shape = 'u32[]', space=smem, size = 0x4, offset = 0x4, fixed_abs, tag = 'smem constant byte address 0x4 - core index']
  #allocation1 [shape = 'u32[72,128]{1,0:T(1,128)}', space=vmem, size = 0x9000, scoped, tag = 'internal scratch']
  %s0 = inlined_call_operand.vmem [shape: f32[8,256], index: 0, kind: input, shape index: {}]
  %s1 = inlined_call_operand.vmem [shape: f32[8,256], index: 1, kind: input, shape index: {}]
  %s2 = inlined_call_operand.vmem [shape: f32[4,256], index: 2, kind: input, shape index: {}]
  %s3 = inlined_call_operand.vmem [shape: f32[3,8,8], index: 3, kind: input, shape index: {}]
  %s4 = inlined_call_operand.vmem [shape: f32[8,8], index: 4, kind: input, shape index: {}]
  %s5 = inlined_call_operand.vmem [shape: f32[3,8,1], index: 5, kind: input, shape index: {}]
  %s6 = inlined_call_operand.vmem [shape: f32[3,8,1], index: 6, kind: input, shape index: {}]
  %s7 = inlined_call_operand.vmem [shape: f32[3,8,1], index: 7, kind: input, shape index: {}]
  %s8 = inlined_call_operand.vmem [shape: f32[8,256], index: 8, kind: output, shape index: {}]
  %s9 = sld [smem:[#allocation0]]
  $region42: #{mask_cnn_forward.1} parent=0
    _
  %s11 = ssub.s32 1, %s9
  %s12 = scalar_select 0, %s11, %s9
  // Predicated region
  $region2: #{mask_cnn_forward.1} parent=0 // pred_check
    _
  $region3: #{mask_cnn_forward.1} parent=0 // pred_check_branch
    %14 = sbr.rel (0) target = $region5
  $region4: #{mask_cnn_forward.1} parent=0 // pred_region
    _
  $region5: #{mask_cnn_forward.1} parent=0 // pred_fallthru
    _
  // Predicated region
  $region6: #{mask_cnn_forward.1} parent=0 // pred_check
    _
  $region7: #{mask_cnn_forward.1} parent=0 // pred_check_branch
    %16 = sbr.rel (0) target = $region9
  $region8: #{mask_cnn_forward.1} parent=0 // pred_region
    _
  $region9: #{mask_cnn_forward.1} parent=0 // pred_fallthru
    _
  // Predicated region
  $region10: #{mask_cnn_forward.1} parent=0 // pred_check
    _
  $region11: #{mask_cnn_forward.1} parent=0 // pred_check_branch
    %18 = sbr.rel (0) target = $region13
  $region12: #{mask_cnn_forward.1} parent=0 // pred_region
    _
  $region13: #{mask_cnn_forward.1} parent=0 // pred_fallthru
    _
  // Predicated region
  $region14: #{mask_cnn_forward.1} parent=0 // pred_check
    _
  $region15: #{mask_cnn_forward.1} parent=0 // pred_check_branch
    %20 = sbr.rel (0) target = $region17
  $region16: #{mask_cnn_forward.1} parent=0 // pred_region
    _
  $region17: #{mask_cnn_forward.1} parent=0 // pred_fallthru
    _
  // Predicated region
  $region18: #{mask_cnn_forward.1} parent=0 // pred_check
    _
  $region19: #{mask_cnn_forward.1} parent=0 // pred_check_branch
    %22 = sbr.rel (0) target = $region21
  $region20: #{mask_cnn_forward.1} parent=0 // pred_region
    _
  $region21: #{mask_cnn_forward.1} parent=0 // pred_fallthru
    _
  // Predicated region
  $region22: #{mask_cnn_forward.1} parent=0 // pred_check
    _
  $region23: #{mask_cnn_forward.1} parent=0 // pred_check_branch
    %24 = sbr.rel (0) target = $region25
  $region24: #{mask_cnn_forward.1} parent=0 // pred_region
    _
  $region25: #{mask_cnn_forward.1} parent=0 // pred_fallthru
    _
  // Predicated region
  $region26: #{mask_cnn_forward.1} parent=0 // pred_check
    _
  $region27: #{mask_cnn_forward.1} parent=0 // pred_check_branch
    %26 = sbr.rel (0) target = $region29
  $region28: #{mask_cnn_forward.1} parent=0 // pred_region
    _
  $region29: #{mask_cnn_forward.1} parent=0 // pred_fallthru
    _
  // Predicated region
  $region30: #{mask_cnn_forward.1} parent=0 // pred_check
    _
  $region31: #{mask_cnn_forward.1} parent=0 // pred_check_branch
    %28 = sbr.rel (0) target = $region33
  $region32: #{mask_cnn_forward.1} parent=0 // pred_region
    _
  $region33: #{mask_cnn_forward.1} parent=0 // pred_fallthru
    _
  %v29 = vld [vmem:[%s0] sm:$0xff]
  %v30 = vld [vmem:[%s0 + $0x8] sm:$0xff]
  %v31 = vld [vmem:[%s1] sm:$0xff]
  %v32 = vld [vmem:[%s1 + $0x8] sm:$0xff]
  %v33 = vld [vmem:[%s2] sm:$0xff]
  %v35 = vperm.slane %v33, 0
  %v36 = vperm.slane %v33, 4
  %v39 = vperm.slane %v35, 0
  %v40 = vperm.slane %v36, 0
  %v41 = vperm.slane %v33, 1
  %v42 = vperm.slane %v33, 5
  %v45 = vperm.slane %v41, 1
  %v46 = vperm.slane %v42, 1
  %v47 = vperm.slane %v33, 2
  %v48 = vperm.slane %v33, 6
  %v51 = vperm.slane %v47, 2
  %v52 = vperm.slane %v48, 2
  %v53 = vperm.slane %v33, 3
  %v54 = vperm.slane %v33, 7
  %v57 = vperm.slane %v53, 3
  %v58 = vperm.slane %v54, 3
  %v59 = vld [vmem:[%s4] sm:$0xff]
  %v60 = vmul.f32 %v29, %v31
  %v61 = vmul.f32 %v30, %v32
  %62 = vrot.lane.b32.xlu0 %v60, 1
  %v63 = vpop.permute.xlu0 %62
  %64 = vrot.lane.b32.xlu0 %v61, 1
  %v65 = vpop.permute.xlu0 %64
  %v66 = vlaneseq
  %v67 = vand.u32 %v66, 127
  %vm68 = vcmp.lt.s32.totalorder %v67, 1
  %v69 = vsel %vm68, %v63, %v65
  %v70 = vsel %vm68, %v65, %v63
  %v71 = vmul.f32 %v70, %v39
  %v72 = vmul.f32 %v69, %v40
  %v73 = vadd.f32 %v60, %v71
  %v74 = vadd.f32 %v61, %v72
  %75 = vrot.lane.b32.xlu0 %v60, 127
  %v76 = vpop.permute.xlu0 %75
  %77 = vrot.lane.b32.xlu0 %v61, 127
  %v78 = vpop.permute.xlu0 %77
  %vm79 = vcmp.lt.s32.totalorder %v67, 127
  %v80 = vsel %vm79, %v76, %v78
  %v81 = vsel %vm79, %v78, %v76
  %v82 = vmul.f32 %v80, %v45
  %v83 = vmul.f32 %v81, %v46
  %v84 = vadd.f32 %v73, %v82
  %v85 = vadd.f32 %v74, %v83
  %86 = vrot.lane.b32.xlu0 %v84, 16
  %v87 = vpop.permute.xlu0 %86
  %88 = vrot.lane.b32.xlu0 %v85, 16
  %v89 = vpop.permute.xlu0 %88
  %vm90 = vcmp.lt.s32.totalorder %v67, 16
  %v91 = vsel %vm90, %v87, %v89
  %v92 = vsel %vm90, %v89, %v87
  %v93 = vmul.f32 %v92, %v51
  %v94 = vmul.f32 %v91, %v52
  %v95 = vadd.f32 %v84, %v93
  %v96 = vadd.f32 %v85, %v94
  %97 = vrot.lane.b32.xlu0 %v84, 112
  %v98 = vpop.permute.xlu0 %97
  %99 = vrot.lane.b32.xlu0 %v85, 112
  %v100 = vpop.permute.xlu0 %99
  %vm101 = vcmp.lt.s32.totalorder %v67, 112
  %v102 = vsel %vm101, %v98, %v100
  %v103 = vsel %vm101, %v100, %v98
  %v104 = vmul.f32 %v102, %v57
  %v105 = vmul.f32 %v103, %v58
  %v106 = vadd.f32 %v95, %v104
  %v107 = vadd.f32 %v96, %v105
  %v108 = vld [vmem:[%s3] sm:$0xff]
  %v109 = vld [vmem:[%s5] sm:$0xff]
  %111 = vset.pattern.permute.xlu0 0
  %112 = vperm.xlu0 %111, %v109
  %v113 = vpop.permute.xlu0 %112
  %vm115 = vcmask 64512
  %v117 = vsel %vm115, %v108, 0
  %119 = vmatpush.msra.mxu0 0.0
  %120 = vmatpush.msra.mxu0 0.0
  %121 = vmatpush.msra.mxu0 0.0
  %122 = vmatpush.msra.mxu0 0.0
  %123 = vmatpush.msra.mxu0 0.0
  %124 = vmatpush.msra.mxu0 0.0
  %125 = vmatpush.msra.mxu0 0.0
  %126 = vmatpush.msra.mxu0 0.0
  %127 = vmatpush.msra.mxu0 0.0
  %128 = vmatpush.msra.mxu0 0.0
  %129 = vmatpush.msra.mxu0 0.0
  %130 = vmatpush.msra.mxu0 0.0
  %131 = vmatpush.msra.mxu0 0.0
  %132 = vmatpush.msra.mxu0 0.0
  %133 = vmatpush.msra.mxu0 0.0
  %134 = vmatpush.msra.mxu0 %v106
  %135 = vmatmul.f32.gmra.mxu0 %v117
  %v136 = vpop.f32.mrf.mxu0
  %v137 = vadd.f32 %v113, %v136
  %138 = vdwg.mxu0
  %139 = vmatpush.msra.mxu0 0.0
  %140 = vmatpush.msra.mxu0 0.0
  %141 = vmatpush.msra.mxu0 0.0
  %142 = vmatpush.msra.mxu0 0.0
  %143 = vmatpush.msra.mxu0 0.0
  %144 = vmatpush.msra.mxu0 0.0
  %145 = vmatpush.msra.mxu0 0.0
  %146 = vmatpush.msra.mxu0 0.0
  %147 = vmatpush.msra.mxu0 0.0
  %148 = vmatpush.msra.mxu0 0.0
  %149 = vmatpush.msra.mxu0 0.0
  %150 = vmatpush.msra.mxu0 0.0
  %151 = vmatpush.msra.mxu0 0.0
  %152 = vmatpush.msra.mxu0 0.0
  %153 = vmatpush.msra.mxu0 0.0
  %154 = vmatpush.msra.mxu0 %v107
  %155 = vmatmul.f32.gmra.mxu0 %v117
  %v156 = vpop.f32.mrf.mxu0
  %v157 = vadd.f32 %v113, %v156
  %158 = vdwg.mxu0
  %v159 = vadd.f32 %v137, %v29
  %v160 = vadd.f32 %v157, %v30
  %v162 = vsel %vm115, %v59, 0
  %164 = vmatpush.msra.mxu0 0.0
  %165 = vmatpush.msra.mxu0 0.0
  %166 = vmatpush.msra.mxu0 0.0
  %167 = vmatpush.msra.mxu0 0.0
  %168 = vmatpush.msra.mxu0 0.0
  %169 = vmatpush.msra.mxu0 0.0
  %170 = vmatpush.msra.mxu0 0.0
  %171 = vmatpush.msra.mxu0 0.0
  %172 = vmatpush.msra.mxu0 0.0
  %173 = vmatpush.msra.mxu0 0.0
  %174 = vmatpush.msra.mxu0 0.0
  %175 = vmatpush.msra.mxu0 0.0
  %176 = vmatpush.msra.mxu0 0.0
  %177 = vmatpush.msra.mxu0 0.0
  %178 = vmatpush.msra.mxu0 0.0
  %179 = vmatpush.msra.mxu0 %v159
  %180 = vmatmul.f32.gmra.mxu0 %v162
  %v181 = vpop.f32.mrf.mxu0
  %v182 = vadd.f32 0.0, %v181
  %183 = vdwg.mxu0
  %184 = vmatpush.msra.mxu0 0.0
  %185 = vmatpush.msra.mxu0 0.0
  %186 = vmatpush.msra.mxu0 0.0
  %187 = vmatpush.msra.mxu0 0.0
  %188 = vmatpush.msra.mxu0 0.0
  %189 = vmatpush.msra.mxu0 0.0
  %190 = vmatpush.msra.mxu0 0.0
  %191 = vmatpush.msra.mxu0 0.0
  %192 = vmatpush.msra.mxu0 0.0
  %193 = vmatpush.msra.mxu0 0.0
  %194 = vmatpush.msra.mxu0 0.0
  %195 = vmatpush.msra.mxu0 0.0
  %196 = vmatpush.msra.mxu0 0.0
  %197 = vmatpush.msra.mxu0 0.0
  %198 = vmatpush.msra.mxu0 0.0
  %199 = vmatpush.msra.mxu0 %v160
  %200 = vmatmul.f32.gmra.mxu0 %v162
  %v201 = vpop.f32.mrf.mxu0
  %v202 = vadd.f32 0.0, %v201
  %203 = vdwg.mxu0
  %v204 = vsub.f32 %v159, %v182
  %v205 = vsub.f32 %v160, %v202
  %v206 = vmul.f32 %v204, %v204
  %v207 = vmul.f32 %v205, %v205
  %208 = vmatpush.msra.mxu0 0.0
  %209 = vmatpush.msra.mxu0 0.0
  %210 = vmatpush.msra.mxu0 0.0
  %211 = vmatpush.msra.mxu0 0.0
  %212 = vmatpush.msra.mxu0 0.0
  %213 = vmatpush.msra.mxu0 0.0
  %214 = vmatpush.msra.mxu0 0.0
  %215 = vmatpush.msra.mxu0 0.0
  %216 = vmatpush.msra.mxu0 0.0
  %217 = vmatpush.msra.mxu0 0.0
  %218 = vmatpush.msra.mxu0 0.0
  %219 = vmatpush.msra.mxu0 0.0
  %220 = vmatpush.msra.mxu0 0.0
  %221 = vmatpush.msra.mxu0 0.0
  %222 = vmatpush.msra.mxu0 0.0
  %223 = vmatpush.msra.mxu0 %v206
  %224 = vmatmul.f32.gmra.mxu0 %v162
  %v225 = vpop.f32.mrf.mxu0
  %v226 = vadd.f32 1e-06, %v225
  %227 = vdwg.mxu0
  %228 = vmatpush.msra.mxu0 0.0
  %229 = vmatpush.msra.mxu0 0.0
  %230 = vmatpush.msra.mxu0 0.0
  %231 = vmatpush.msra.mxu0 0.0
  %232 = vmatpush.msra.mxu0 0.0
  %233 = vmatpush.msra.mxu0 0.0
  %234 = vmatpush.msra.mxu0 0.0
  %235 = vmatpush.msra.mxu0 0.0
  %236 = vmatpush.msra.mxu0 0.0
  %237 = vmatpush.msra.mxu0 0.0
  %238 = vmatpush.msra.mxu0 0.0
  %239 = vmatpush.msra.mxu0 0.0
  %240 = vmatpush.msra.mxu0 0.0
  %241 = vmatpush.msra.mxu0 0.0
  %242 = vmatpush.msra.mxu0 0.0
  %243 = vmatpush.msra.mxu0 %v207
  %244 = vmatmul.f32.gmra.mxu0 %v162
  %v245 = vpop.f32.mrf.mxu0
  %v246 = vadd.f32 1e-06, %v245
  %247 = vdwg.mxu0
  %v248 = vrsqrt.pop %v226
  %v249 = vmul.f32 %v248, %v226
  %v250 = vmul.f32 %v249, %v248
  %v251 = vmul.f32 0.5, %v250
  %v252 = vsub.f32 1.5, %v251
  %v253 = vmul.f32 %v248, %v252
  %vm254 = vweird.f32 %v226
  %vm255 = vweird.f32 %v248
  %vm256 = vmor %vm254, %vm255
  %v257 = vsel %vm256, %v248, %v253
  %v258 = vrsqrt.pop %v246
  %v259 = vmul.f32 %v258, %v246
  %v260 = vmul.f32 %v259, %v258
  %v261 = vmul.f32 0.5, %v260
  %v262 = vsub.f32 1.5, %v261
  %v263 = vmul.f32 %v258, %v262
  %vm264 = vweird.f32 %v246
  %vm265 = vweird.f32 %v258
  %vm266 = vmor %vm264, %vm265
  %v267 = vsel %vm266, %v258, %v263
  %v268 = vmul.f32 %v204, %v257
  %v269 = vmul.f32 %v205, %v267
  %v270 = vld [vmem:[%s6] sm:$0xff]
  %272 = vset.pattern.permute.xlu0 0
  %273 = vperm.xlu0 %272, %v270
  %v274 = vpop.permute.xlu0 %273
  %v276 = vmul.f32 %v268, %v274
  %v277 = vmul.f32 %v269, %v274
  %v278 = vld [vmem:[%s7] sm:$0xff]
  %280 = vset.pattern.permute.xlu0 0
  %281 = vperm.xlu0 %280, %v278
  %v282 = vpop.permute.xlu0 %281
  %v284 = vadd.f32 %v276, %v282
  %v285 = vadd.f32 %v277, %v282
  %v286 = vmul.f32 %v284, 0.5
  %v287 = vmul.f32 %v285, 0.5
  %v288 = vmul.f32 %v284, 0.70710677
  %v289 = vmul.f32 %v285, 0.70710677
  %vm290 = vcmp.lt.f32.partialorder %v288, 0.0
  %vm291 = vcmp.lt.f32.partialorder %v289, 0.0
  %v292 = vsel %vm290, -1.0, 1.0
  %v293 = vsel %vm291, -1.0, 1.0
  %v294 = vand.u32 2147483647, %v288
  %v295 = vand.u32 2147483647, %v289
  %v296 = vmul.f32 %v294, 0.3275911
  %v297 = vmul.f32 %v295, 0.3275911
  %v298 = vadd.f32 %v296, 1.0
  %v299 = vadd.f32 %v297, 1.0
  %v300 = vrcp.pop %v298
  %v301 = vrcp.pop %v299
  %v302 = vmul.f32 %v298, %v300
  %v303 = vmul.f32 %v299, %v301
  %v304 = vsub.f32 2.0, %v302
  %v305 = vsub.f32 2.0, %v303
  %v306 = vmul.f32 %v300, %v304
  %v307 = vmul.f32 %v301, %v305
  %v308 = vmul.f32 %v306, 1.0614054
  %v309 = vmul.f32 %v307, 1.0614054
  %v310 = vadd.f32 %v308, -1.4531521
  %v311 = vadd.f32 %v309, -1.4531521
  %v312 = vmul.f32 %v310, %v306
  %v313 = vmul.f32 %v311, %v307
  %v314 = vadd.f32 %v312, 1.4214138
  %v315 = vadd.f32 %v313, 1.4214138
  %v316 = vmul.f32 %v314, %v306
  %v317 = vmul.f32 %v315, %v307
  %v318 = vadd.f32 %v316, -0.28449672
  %v319 = vadd.f32 %v317, -0.28449672
  %v320 = vmul.f32 %v318, %v306
  %v321 = vmul.f32 %v319, %v307
  %v322 = vadd.f32 %v320, 0.2548296
  %v323 = vadd.f32 %v321, 0.2548296
  %v324 = vmul.f32 %v322, %v306
  %v325 = vmul.f32 %v323, %v307
  %v326 = vsub.f32 0.0, %v294
  %v327 = vsub.f32 0.0, %v295
  %v328 = vmul.f32 %v326, %v294
  %v329 = vmul.f32 %v327, %v295
  %v330 = vmul.f32 %v328, 1.442695
  %v331 = vpow.pop %v330
  %v332 = vmul.f32 %v329, 1.442695
  %v333 = vpow.pop %v332
  %v334 = vmul.f32 %v324, %v331
  %v335 = vmul.f32 %v325, %v333
  %v336 = vsub.f32 1.0, %v334
  %v337 = vsub.f32 1.0, %v335
  %v338 = vmul.f32 %v292, %v336
  %v339 = vmul.f32 %v293, %v337
  %v340 = vadd.f32 %v338, 1.0
  %v341 = vadd.f32 %v339, 1.0
  %v342 = vmul.f32 %v286, %v340
  %v343 = vmul.f32 %v287, %v341
  %v344 = vmul.f32 %v342, %v31
  %v345 = vmul.f32 %v343, %v32
  %346 = vrot.lane.b32.xlu0 %v344, 1
  %v347 = vpop.permute.xlu0 %346
  %348 = vrot.lane.b32.xlu0 %v345, 1
  %v349 = vpop.permute.xlu0 %348
  %v350 = vsel %vm68, %v347, %v349
  %v351 = vsel %vm68, %v349, %v347
  %v352 = vmul.f32 %v351, %v39
  %v353 = vmul.f32 %v350, %v40
  %v354 = vadd.f32 %v344, %v352
  %v355 = vadd.f32 %v345, %v353
  %356 = vrot.lane.b32.xlu0 %v344, 127
  %v357 = vpop.permute.xlu0 %356
  %358 = vrot.lane.b32.xlu0 %v345, 127
  %v359 = vpop.permute.xlu0 %358
  %v360 = vsel %vm79, %v357, %v359
  %v361 = vsel %vm79, %v359, %v357
  %v362 = vmul.f32 %v360, %v45
  %v363 = vmul.f32 %v361, %v46
  %v364 = vadd.f32 %v354, %v362
  %v365 = vadd.f32 %v355, %v363
  %366 = vrot.lane.b32.xlu0 %v364, 16
  %v367 = vpop.permute.xlu0 %366
  %368 = vrot.lane.b32.xlu0 %v365, 16
  %v369 = vpop.permute.xlu0 %368
  %v370 = vsel %vm90, %v367, %v369
  %v371 = vsel %vm90, %v369, %v367
  %v372 = vmul.f32 %v371, %v51
  %v373 = vmul.f32 %v370, %v52
  %v374 = vadd.f32 %v364, %v372
  %v375 = vadd.f32 %v365, %v373
  %376 = vrot.lane.b32.xlu0 %v364, 112
  %v377 = vpop.permute.xlu0 %376
  %378 = vrot.lane.b32.xlu0 %v365, 112
  %v379 = vpop.permute.xlu0 %378
  %v380 = vsel %vm101, %v377, %v379
  %v381 = vsel %vm101, %v379, %v377
  %v382 = vmul.f32 %v380, %v57
  %v383 = vmul.f32 %v381, %v58
  %v384 = vadd.f32 %v374, %v382
  %v385 = vadd.f32 %v375, %v383
  %s386 = scalar_lea.vmem %s3, 8
  %v387 = vld [vmem:[%s386] sm:$0xff]
  %s388 = scalar_lea.vmem %s5, 8
  %v389 = vld [vmem:[%s388] sm:$0xff]
  %391 = vset.pattern.permute.xlu0 0
  %392 = vperm.xlu0 %391, %v389
  %v393 = vpop.permute.xlu0 %392
  %v396 = vsel %vm115, %v387, 0
  %398 = vmatpush.msra.mxu0 0.0
  %399 = vmatpush.msra.mxu0 0.0
  %400 = vmatpush.msra.mxu0 0.0
  %401 = vmatpush.msra.mxu0 0.0
  %402 = vmatpush.msra.mxu0 0.0
  %403 = vmatpush.msra.mxu0 0.0
  %404 = vmatpush.msra.mxu0 0.0
  %405 = vmatpush.msra.mxu0 0.0
  %406 = vmatpush.msra.mxu0 0.0
  %407 = vmatpush.msra.mxu0 0.0
  %408 = vmatpush.msra.mxu0 0.0
  %409 = vmatpush.msra.mxu0 0.0
  %410 = vmatpush.msra.mxu0 0.0
  %411 = vmatpush.msra.mxu0 0.0
  %412 = vmatpush.msra.mxu0 0.0
  %413 = vmatpush.msra.mxu0 %v384
  %414 = vmatmul.f32.gmra.mxu0 %v396
  %v415 = vpop.f32.mrf.mxu0
  %v416 = vadd.f32 %v393, %v415
  %417 = vdwg.mxu0
  %418 = vmatpush.msra.mxu0 0.0
  %419 = vmatpush.msra.mxu0 0.0
  %420 = vmatpush.msra.mxu0 0.0
  %421 = vmatpush.msra.mxu0 0.0
  %422 = vmatpush.msra.mxu0 0.0
  %423 = vmatpush.msra.mxu0 0.0
  %424 = vmatpush.msra.mxu0 0.0
  %425 = vmatpush.msra.mxu0 0.0
  %426 = vmatpush.msra.mxu0 0.0
  %427 = vmatpush.msra.mxu0 0.0
  %428 = vmatpush.msra.mxu0 0.0
  %429 = vmatpush.msra.mxu0 0.0
  %430 = vmatpush.msra.mxu0 0.0
  %431 = vmatpush.msra.mxu0 0.0
  %432 = vmatpush.msra.mxu0 0.0
  %433 = vmatpush.msra.mxu0 %v385
  %434 = vmatmul.f32.gmra.mxu0 %v396
  %v435 = vpop.f32.mrf.mxu0
  %v436 = vadd.f32 %v393, %v435
  %437 = vdwg.mxu0
  %v438 = vadd.f32 %v416, %v284
  %v439 = vadd.f32 %v436, %v285
  %440 = vmatpush.msra.mxu0 0.0
  %441 = vmatpush.msra.mxu0 0.0
  %442 = vmatpush.msra.mxu0 0.0
  %443 = vmatpush.msra.mxu0 0.0
  %444 = vmatpush.msra.mxu0 0.0
  %445 = vmatpush.msra.mxu0 0.0
  %446 = vmatpush.msra.mxu0 0.0
  %447 = vmatpush.msra.mxu0 0.0
  %448 = vmatpush.msra.mxu0 0.0
  %449 = vmatpush.msra.mxu0 0.0
  %450 = vmatpush.msra.mxu0 0.0
  %451 = vmatpush.msra.mxu0 0.0
  %452 = vmatpush.msra.mxu0 0.0
  %453 = vmatpush.msra.mxu0 0.0
  %454 = vmatpush.msra.mxu0 0.0
  %455 = vmatpush.msra.mxu0 %v438
  %456 = vmatmul.f32.gmra.mxu0 %v162
  %v457 = vpop.f32.mrf.mxu0
  %v458 = vadd.f32 0.0, %v457
  %459 = vdwg.mxu0
  %460 = vmatpush.msra.mxu0 0.0
  %461 = vmatpush.msra.mxu0 0.0
  %462 = vmatpush.msra.mxu0 0.0
  %463 = vmatpush.msra.mxu0 0.0
  %464 = vmatpush.msra.mxu0 0.0
  %465 = vmatpush.msra.mxu0 0.0
  %466 = vmatpush.msra.mxu0 0.0
  %467 = vmatpush.msra.mxu0 0.0
  %468 = vmatpush.msra.mxu0 0.0
  %469 = vmatpush.msra.mxu0 0.0
  %470 = vmatpush.msra.mxu0 0.0
  %471 = vmatpush.msra.mxu0 0.0
  %472 = vmatpush.msra.mxu0 0.0
  %473 = vmatpush.msra.mxu0 0.0
  %474 = vmatpush.msra.mxu0 0.0
  %475 = vmatpush.msra.mxu0 %v439
  %476 = vmatmul.f32.gmra.mxu0 %v162
  %v477 = vpop.f32.mrf.mxu0
  %v478 = vadd.f32 0.0, %v477
  %479 = vdwg.mxu0
  %v480 = vsub.f32 %v438, %v458
  %v481 = vsub.f32 %v439, %v478
  %v482 = vmul.f32 %v480, %v480
  %v483 = vmul.f32 %v481, %v481
  %484 = vmatpush.msra.mxu0 0.0
  %485 = vmatpush.msra.mxu0 0.0
  %486 = vmatpush.msra.mxu0 0.0
  %487 = vmatpush.msra.mxu0 0.0
  %488 = vmatpush.msra.mxu0 0.0
  %489 = vmatpush.msra.mxu0 0.0
  %490 = vmatpush.msra.mxu0 0.0
  %491 = vmatpush.msra.mxu0 0.0
  %492 = vmatpush.msra.mxu0 0.0
  %493 = vmatpush.msra.mxu0 0.0
  %494 = vmatpush.msra.mxu0 0.0
  %495 = vmatpush.msra.mxu0 0.0
  %496 = vmatpush.msra.mxu0 0.0
  %497 = vmatpush.msra.mxu0 0.0
  %498 = vmatpush.msra.mxu0 0.0
  %499 = vmatpush.msra.mxu0 %v482
  %500 = vmatmul.f32.gmra.mxu0 %v162
  %v501 = vpop.f32.mrf.mxu0
  %v502 = vadd.f32 1e-06, %v501
  %503 = vdwg.mxu0
  %504 = vmatpush.msra.mxu0 0.0
  %505 = vmatpush.msra.mxu0 0.0
  %506 = vmatpush.msra.mxu0 0.0
  %507 = vmatpush.msra.mxu0 0.0
  %508 = vmatpush.msra.mxu0 0.0
  %509 = vmatpush.msra.mxu0 0.0
  %510 = vmatpush.msra.mxu0 0.0
  %511 = vmatpush.msra.mxu0 0.0
  %512 = vmatpush.msra.mxu0 0.0
  %513 = vmatpush.msra.mxu0 0.0
  %514 = vmatpush.msra.mxu0 0.0
  %515 = vmatpush.msra.mxu0 0.0
  %516 = vmatpush.msra.mxu0 0.0
  %517 = vmatpush.msra.mxu0 0.0
  %518 = vmatpush.msra.mxu0 0.0
  %519 = vmatpush.msra.mxu0 %v483
  %520 = vmatmul.f32.gmra.mxu0 %v162
  %v521 = vpop.f32.mrf.mxu0
  %v522 = vadd.f32 1e-06, %v521
  %523 = vdwg.mxu0
  %v524 = vrsqrt.pop %v502
  %v525 = vmul.f32 %v524, %v502
  %v526 = vmul.f32 %v525, %v524
  %v527 = vmul.f32 0.5, %v526
  %v528 = vsub.f32 1.5, %v527
  %v529 = vmul.f32 %v524, %v528
  %vm530 = vweird.f32 %v502
  %vm531 = vweird.f32 %v524
  %vm532 = vmor %vm530, %vm531
  %v533 = vsel %vm532, %v524, %v529
  %v534 = vrsqrt.pop %v522
  %v535 = vmul.f32 %v534, %v522
  %v536 = vmul.f32 %v535, %v534
  %v537 = vmul.f32 0.5, %v536
  %v538 = vsub.f32 1.5, %v537
  %v539 = vmul.f32 %v534, %v538
  %vm540 = vweird.f32 %v522
  %vm541 = vweird.f32 %v534
  %vm542 = vmor %vm540, %vm541
  %v543 = vsel %vm542, %v534, %v539
  %v544 = vmul.f32 %v480, %v533
  %v545 = vmul.f32 %v481, %v543
  %s546 = scalar_lea.vmem %s6, 8
  %v547 = vld [vmem:[%s546] sm:$0xff]
  %549 = vset.pattern.permute.xlu0 0
  %550 = vperm.xlu0 %549, %v547
  %v551 = vpop.permute.xlu0 %550
  %v553 = vmul.f32 %v544, %v551
  %v554 = vmul.f32 %v545, %v551
  %s555 = scalar_lea.vmem %s7, 8
  %v556 = vld [vmem:[%s555] sm:$0xff]
  %558 = vset.pattern.permute.xlu0 0
  %559 = vperm.xlu0 %558, %v556
  %v560 = vpop.permute.xlu0 %559
  %v562 = vadd.f32 %v553, %v560
  %v563 = vadd.f32 %v554, %v560
  %v564 = vmul.f32 %v562, 0.5
  %v565 = vmul.f32 %v563, 0.5
  %v566 = vmul.f32 %v562, 0.70710677
  %v567 = vmul.f32 %v563, 0.70710677
  %vm568 = vcmp.lt.f32.partialorder %v566, 0.0
  %vm569 = vcmp.lt.f32.partialorder %v567, 0.0
  %v570 = vsel %vm568, -1.0, 1.0
  %v571 = vsel %vm569, -1.0, 1.0
  %v572 = vand.u32 2147483647, %v566
  %v573 = vand.u32 2147483647, %v567
  %v574 = vmul.f32 %v572, 0.3275911
  %v575 = vmul.f32 %v573, 0.3275911
  %v576 = vadd.f32 %v574, 1.0
  %v577 = vadd.f32 %v575, 1.0
  %v578 = vrcp.pop %v576
  %v579 = vrcp.pop %v577
  %v580 = vmul.f32 %v576, %v578
  %v581 = vmul.f32 %v577, %v579
  %v582 = vsub.f32 2.0, %v580
  %v583 = vsub.f32 2.0, %v581
  %v584 = vmul.f32 %v578, %v582
  %v585 = vmul.f32 %v579, %v583
  %v586 = vmul.f32 %v584, 1.0614054
  %v587 = vmul.f32 %v585, 1.0614054
  %v588 = vadd.f32 %v586, -1.4531521
  %v589 = vadd.f32 %v587, -1.4531521
  %v590 = vmul.f32 %v588, %v584
  %v591 = vmul.f32 %v589, %v585
  %v592 = vadd.f32 %v590, 1.4214138
  %v593 = vadd.f32 %v591, 1.4214138
  %v594 = vmul.f32 %v592, %v584
  %v595 = vmul.f32 %v593, %v585
  %v596 = vadd.f32 %v594, -0.28449672
  %v597 = vadd.f32 %v595, -0.28449672
  %v598 = vmul.f32 %v596, %v584
  %v599 = vmul.f32 %v597, %v585
  %v600 = vadd.f32 %v598, 0.2548296
  %v601 = vadd.f32 %v599, 0.2548296
  %v602 = vmul.f32 %v600, %v584
  %v603 = vmul.f32 %v601, %v585
  %v604 = vsub.f32 0.0, %v572
  %v605 = vsub.f32 0.0, %v573
  %v606 = vmul.f32 %v604, %v572
  %v607 = vmul.f32 %v605, %v573
  %v608 = vmul.f32 %v606, 1.442695
  %v609 = vpow.pop %v608
  %v610 = vmul.f32 %v607, 1.442695
  %v611 = vpow.pop %v610
  %v612 = vmul.f32 %v602, %v609
  %v613 = vmul.f32 %v603, %v611
  %v614 = vsub.f32 1.0, %v612
  %v615 = vsub.f32 1.0, %v613
  %v616 = vmul.f32 %v570, %v614
  %v617 = vmul.f32 %v571, %v615
  %v618 = vadd.f32 %v616, 1.0
  %v619 = vadd.f32 %v617, 1.0
  %v620 = vmul.f32 %v564, %v618
  %v621 = vmul.f32 %v565, %v619
  %v622 = vmul.f32 %v620, %v31
  %v623 = vmul.f32 %v621, %v32
  %624 = vrot.lane.b32.xlu0 %v622, 1
  %v625 = vpop.permute.xlu0 %624
  %626 = vrot.lane.b32.xlu0 %v623, 1
  %v627 = vpop.permute.xlu0 %626
  %v628 = vsel %vm68, %v625, %v627
  %v629 = vsel %vm68, %v627, %v625
  %v630 = vmul.f32 %v629, %v39
  %v631 = vmul.f32 %v628, %v40
  %v632 = vadd.f32 %v622, %v630
  %v633 = vadd.f32 %v623, %v631
  %634 = vrot.lane.b32.xlu0 %v622, 127
  %v635 = vpop.permute.xlu0 %634
  %636 = vrot.lane.b32.xlu0 %v623, 127
  %v637 = vpop.permute.xlu0 %636
  %v638 = vsel %vm79, %v635, %v637
  %v639 = vsel %vm79, %v637, %v635
  %v640 = vmul.f32 %v638, %v45
  %v641 = vmul.f32 %v639, %v46
  %v642 = vadd.f32 %v632, %v640
  %v643 = vadd.f32 %v633, %v641
  %644 = vrot.lane.b32.xlu0 %v642, 16
  %v645 = vpop.permute.xlu0 %644
  %646 = vrot.lane.b32.xlu0 %v643, 16
  %v647 = vpop.permute.xlu0 %646
  %v648 = vsel %vm90, %v645, %v647
  %v649 = vsel %vm90, %v647, %v645
  %v650 = vmul.f32 %v649, %v51
  %v651 = vmul.f32 %v648, %v52
  %v652 = vadd.f32 %v642, %v650
  %v653 = vadd.f32 %v643, %v651
  %654 = vrot.lane.b32.xlu0 %v642, 112
  %v655 = vpop.permute.xlu0 %654
  %656 = vrot.lane.b32.xlu0 %v643, 112
  %v657 = vpop.permute.xlu0 %656
  %v658 = vsel %vm101, %v655, %v657
  %v659 = vsel %vm101, %v657, %v655
  %v660 = vmul.f32 %v658, %v57
  %v661 = vmul.f32 %v659, %v58
  %v662 = vadd.f32 %v652, %v660
  %v663 = vadd.f32 %v653, %v661
  %s664 = scalar_lea.vmem %s3, 16
  %v665 = vld [vmem:[%s664] sm:$0xff]
  %s666 = scalar_lea.vmem %s5, 16
  %v667 = vld [vmem:[%s666] sm:$0xff]
  %669 = vset.pattern.permute.xlu0 0
  %670 = vperm.xlu0 %669, %v667
  %v671 = vpop.permute.xlu0 %670
  %v674 = vsel %vm115, %v665, 0
  %676 = vmatpush.msra.mxu0 0.0
  %677 = vmatpush.msra.mxu0 0.0
  %678 = vmatpush.msra.mxu0 0.0
  %679 = vmatpush.msra.mxu0 0.0
  %680 = vmatpush.msra.mxu0 0.0
  %681 = vmatpush.msra.mxu0 0.0
  %682 = vmatpush.msra.mxu0 0.0
  %683 = vmatpush.msra.mxu0 0.0
  %684 = vmatpush.msra.mxu0 0.0
  %685 = vmatpush.msra.mxu0 0.0
  %686 = vmatpush.msra.mxu0 0.0
  %687 = vmatpush.msra.mxu0 0.0
  %688 = vmatpush.msra.mxu0 0.0
  %689 = vmatpush.msra.mxu0 0.0
  %690 = vmatpush.msra.mxu0 0.0
  %691 = vmatpush.msra.mxu0 %v662
  %692 = vmatmul.f32.gmra.mxu0 %v674
  %v693 = vpop.f32.mrf.mxu0
  %v694 = vadd.f32 %v671, %v693
  %695 = vdwg.mxu0
  %696 = vmatpush.msra.mxu0 0.0
  %697 = vmatpush.msra.mxu0 0.0
  %698 = vmatpush.msra.mxu0 0.0
  %699 = vmatpush.msra.mxu0 0.0
  %700 = vmatpush.msra.mxu0 0.0
  %701 = vmatpush.msra.mxu0 0.0
  %702 = vmatpush.msra.mxu0 0.0
  %703 = vmatpush.msra.mxu0 0.0
  %704 = vmatpush.msra.mxu0 0.0
  %705 = vmatpush.msra.mxu0 0.0
  %706 = vmatpush.msra.mxu0 0.0
  %707 = vmatpush.msra.mxu0 0.0
  %708 = vmatpush.msra.mxu0 0.0
  %709 = vmatpush.msra.mxu0 0.0
  %710 = vmatpush.msra.mxu0 0.0
  %711 = vmatpush.msra.mxu0 %v663
  %712 = vmatmul.f32.gmra.mxu0 %v674
  %v713 = vpop.f32.mrf.mxu0
  %v714 = vadd.f32 %v671, %v713
  %715 = vdwg.mxu0
  %v716 = vadd.f32 %v694, %v562
  %v717 = vadd.f32 %v714, %v563
  %718 = vmatpush.msra.mxu0 0.0
  %719 = vmatpush.msra.mxu0 0.0
  %720 = vmatpush.msra.mxu0 0.0
  %721 = vmatpush.msra.mxu0 0.0
  %722 = vmatpush.msra.mxu0 0.0
  %723 = vmatpush.msra.mxu0 0.0
  %724 = vmatpush.msra.mxu0 0.0
  %725 = vmatpush.msra.mxu0 0.0
  %726 = vmatpush.msra.mxu0 0.0
  %727 = vmatpush.msra.mxu0 0.0
  %728 = vmatpush.msra.mxu0 0.0
  %729 = vmatpush.msra.mxu0 0.0
  %730 = vmatpush.msra.mxu0 0.0
  %731 = vmatpush.msra.mxu0 0.0
  %732 = vmatpush.msra.mxu0 0.0
  %733 = vmatpush.msra.mxu0 %v716
  %734 = vmatmul.f32.gmra.mxu0 %v162
  %v735 = vpop.f32.mrf.mxu0
  %v736 = vadd.f32 0.0, %v735
  %737 = vdwg.mxu0
  %738 = vmatpush.msra.mxu0 0.0
  %739 = vmatpush.msra.mxu0 0.0
  %740 = vmatpush.msra.mxu0 0.0
  %741 = vmatpush.msra.mxu0 0.0
  %742 = vmatpush.msra.mxu0 0.0
  %743 = vmatpush.msra.mxu0 0.0
  %744 = vmatpush.msra.mxu0 0.0
  %745 = vmatpush.msra.mxu0 0.0
  %746 = vmatpush.msra.mxu0 0.0
  %747 = vmatpush.msra.mxu0 0.0
  %748 = vmatpush.msra.mxu0 0.0
  %749 = vmatpush.msra.mxu0 0.0
  %750 = vmatpush.msra.mxu0 0.0
  %751 = vmatpush.msra.mxu0 0.0
  %752 = vmatpush.msra.mxu0 0.0
  %753 = vmatpush.msra.mxu0 %v717
  %754 = vmatmul.f32.gmra.mxu0 %v162
  %v755 = vpop.f32.mrf.mxu0
  %v756 = vadd.f32 0.0, %v755
  %757 = vdwg.mxu0
  %v758 = vsub.f32 %v716, %v736
  %v759 = vsub.f32 %v717, %v756
  %v760 = vmul.f32 %v758, %v758
  %v761 = vmul.f32 %v759, %v759
  %762 = vmatpush.msra.mxu0 0.0
  %763 = vmatpush.msra.mxu0 0.0
  %764 = vmatpush.msra.mxu0 0.0
  %765 = vmatpush.msra.mxu0 0.0
  %766 = vmatpush.msra.mxu0 0.0
  %767 = vmatpush.msra.mxu0 0.0
  %768 = vmatpush.msra.mxu0 0.0
  %769 = vmatpush.msra.mxu0 0.0
  %770 = vmatpush.msra.mxu0 0.0
  %771 = vmatpush.msra.mxu0 0.0
  %772 = vmatpush.msra.mxu0 0.0
  %773 = vmatpush.msra.mxu0 0.0
  %774 = vmatpush.msra.mxu0 0.0
  %775 = vmatpush.msra.mxu0 0.0
  %776 = vmatpush.msra.mxu0 0.0
  %777 = vmatpush.msra.mxu0 %v760
  %778 = vmatmul.f32.gmra.mxu0 %v162
  %v779 = vpop.f32.mrf.mxu0
  %v780 = vadd.f32 1e-06, %v779
  %781 = vdwg.mxu0
  %782 = vmatpush.msra.mxu0 0.0
  %783 = vmatpush.msra.mxu0 0.0
  %784 = vmatpush.msra.mxu0 0.0
  %785 = vmatpush.msra.mxu0 0.0
  %786 = vmatpush.msra.mxu0 0.0
  %787 = vmatpush.msra.mxu0 0.0
  %788 = vmatpush.msra.mxu0 0.0
  %789 = vmatpush.msra.mxu0 0.0
  %790 = vmatpush.msra.mxu0 0.0
  %791 = vmatpush.msra.mxu0 0.0
  %792 = vmatpush.msra.mxu0 0.0
  %793 = vmatpush.msra.mxu0 0.0
  %794 = vmatpush.msra.mxu0 0.0
  %795 = vmatpush.msra.mxu0 0.0
  %796 = vmatpush.msra.mxu0 0.0
  %797 = vmatpush.msra.mxu0 %v761
  %798 = vmatmul.f32.gmra.mxu0 %v162
  %v799 = vpop.f32.mrf.mxu0
  %v800 = vadd.f32 1e-06, %v799
  %801 = vdwg.mxu0
  %v802 = vrsqrt.pop %v780
  %v803 = vmul.f32 %v802, %v780
  %v804 = vmul.f32 %v803, %v802
  %v805 = vmul.f32 0.5, %v804
  %v806 = vsub.f32 1.5, %v805
  %v807 = vmul.f32 %v802, %v806
  %vm808 = vweird.f32 %v780
  %vm809 = vweird.f32 %v802
  %vm810 = vmor %vm808, %vm809
  %v811 = vsel %vm810, %v802, %v807
  %v812 = vrsqrt.pop %v800
  %v813 = vmul.f32 %v812, %v800
  %v814 = vmul.f32 %v813, %v812
  %v815 = vmul.f32 0.5, %v814
  %v816 = vsub.f32 1.5, %v815
  %v817 = vmul.f32 %v812, %v816
  %vm818 = vweird.f32 %v800
  %vm819 = vweird.f32 %v812
  %vm820 = vmor %vm818, %vm819
  %v821 = vsel %vm820, %v812, %v817
  %v822 = vmul.f32 %v758, %v811
  %v823 = vmul.f32 %v759, %v821
  %s824 = scalar_lea.vmem %s6, 16
  %v825 = vld [vmem:[%s824] sm:$0xff]
  %827 = vset.pattern.permute.xlu0 0
  %828 = vperm.xlu0 %827, %v825
  %v829 = vpop.permute.xlu0 %828
  %v831 = vmul.f32 %v822, %v829
  %v832 = vmul.f32 %v823, %v829
  %s833 = scalar_lea.vmem %s7, 16
  %v834 = vld [vmem:[%s833] sm:$0xff]
  %836 = vset.pattern.permute.xlu0 0
  %837 = vperm.xlu0 %836, %v834
  %v838 = vpop.permute.xlu0 %837
  %v840 = vadd.f32 %v831, %v838
  %v841 = vadd.f32 %v832, %v838
  %842 = vst [vmem:[%s8] sm:$0xff] %v840
  %843 = vst [vmem:[%s8 + $0x8] sm:$0xff] %v841
  // Predicated region
  $region34: #{mask_cnn_forward.1} parent=0 // pred_check
    _
  $region35: #{mask_cnn_forward.1} parent=0 // pred_check_branch
    %845 = sbr.rel (0) target = $region37
  $region36: #{mask_cnn_forward.1} parent=0 // pred_region
    _
  $region37: #{mask_cnn_forward.1} parent=0 // pred_fallthru
    _
  // Predicated region
  $region38: #{mask_cnn_forward.1} parent=0 // pred_check
    _
  $region39: #{mask_cnn_forward.1} parent=0 // pred_check_branch
    %847 = sbr.rel (0) target = $region41
  $region40: #{mask_cnn_forward.1} parent=0 // pred_region
    _
  $region41: #{mask_cnn_forward.1} parent=0 // pred_fallthru
    _

</llo_original>
